<compile_context>
chip_gen: v7x
topology: tpu7x:2x2x1
jax: 0.10.0
libtpu: 0.0.40
codegen_flags: <defaults>
</compile_context>

<pallas_src>
import jax
import jax.numpy as jnp
from jax.experimental import pallas as pl
from jax.experimental.pallas import tpu as pltpu


def _tatt_f1_kernel(x_ref, w_ref, b_ref, o_ref):
    # x_ref: (B, C, N, T) f32 VMEM  -- the whole seq tensor (tiny)
    # w_ref: (C,)         f32 SMEM  -- dilation_conv_f 1x1 weights
    # b_ref: (1,)         f32 SMEM  -- dilation_conv_f bias
    # o_ref: (B, T, N)    f32 VMEM  -- f1 in its final [B, T, N] layout
    x = x_ref[...]                       # one dense load of the whole slab
    C = x.shape[1]

    # 1x1 conv with a single output channel == sum_c w[c] * x[:, c] + bias.
    # Unrolled scalar-broadcast multiply-accumulate on the VPU (C is tiny/static).
    acc = x[:, 0, :, :] * w_ref[0]
    for c in range(1, C):
        acc = acc + x[:, c, :, :] * w_ref[c]
    acc = acc + b_ref[0]                 # (B, N, T)

    # The PyTorch conv ran on seq.permute(0,1,3,2) -> output spatial layout (T, N).
    # Do the minor-dim swap in-kernel (XLU is idle) so no post-kernel XLA transpose
    # is needed.
    o_ref[...] = jnp.swapaxes(acc, 1, 2)  # (B, T, N)


def tatt_f1(seq, conv_w, conv_b):
    """seq: [B, C, N, T] f32 -> f1 = squeeze(conv1x1_f(seq.permute(0,1,3,2)))."""
    B, C, N, T = seq.shape

    w = conv_w.reshape(C).astype(jnp.float32)   # (C,)  1-D -> 32-byte SMEM footprint
    b = conv_b.reshape(1).astype(jnp.float32)   # (1,)

    out = pl.pallas_call(
        _tatt_f1_kernel,
        out_shape=jax.ShapeDtypeStruct((B, T, N), jnp.float32),
        in_specs=[
            pl.BlockSpec(memory_space=pltpu.MemorySpace.VMEM),   # seq (whole array)
            pl.BlockSpec(memory_space=pltpu.MemorySpace.SMEM),   # conv weights
            pl.BlockSpec(memory_space=pltpu.MemorySpace.SMEM),   # conv bias
        ],
        out_specs=pl.BlockSpec(memory_space=pltpu.MemorySpace.VMEM),
        cost_estimate=pl.CostEstimate(
            flops=2 * B * C * N * T,
            transcendentals=0,
            bytes_accessed=(B * C * N * T + B * T * N + C + 1) * 4,
        ),
    )(seq, w, b)

    # PyTorch's .squeeze() drops the size-1 out-channel dim (already implicit in the
    # kernel's [B, T, N] output) and would also drop the batch dim if B == 1.
    return out[0] if B == 1 else out


if __name__ == "__main__":
    key = jax.random.PRNGKey(0)
    B, C_IN, NUM_NODES, TEM_SIZE = 2, 4, 16, 24  # tem_size=24 matches the module's mask

    k_seq, k_wf, k_bf, k_U, k_v, k_wg, k_bg, k_wr, k_br = jax.random.split(key, 9)

    seq = jax.random.normal(k_seq, (B, C_IN, NUM_NODES, TEM_SIZE), dtype=jnp.float32)

    # dilation_conv_f: Conv2d(c_in, 1, kernel_size=(1,1)) -> weight (1, C_IN, 1, 1), bias (1,)
    w_f = jax.random.uniform(k_wf, (C_IN,), jnp.float32, -0.5, 0.5)
    b_f = jax.random.uniform(k_bf, (1,), jnp.float32, -0.5, 0.5)

    # Remaining __init__ parameters (mirrored for completeness; unused because
    # forward() exits before touching them):
    w_dimred = jax.random.uniform(k_wr, (1, C_IN, 1, 1), jnp.float32, -0.5, 0.5)   # dim_reduction
    b_dimred = jax.random.uniform(k_br, (1,), jnp.float32, -0.5, 0.5)
    w_g = jax.random.uniform(k_wg, (1, NUM_NODES, 1, 1), jnp.float32, -0.5, 0.5)   # dilation_conv_g
    b_g = jax.random.uniform(k_bg, (1,), jnp.float32, -0.5, 0.5)
    U = jax.random.uniform(k_U, (NUM_NODES, NUM_NODES), jnp.float32)               # nn.Parameter U
    v = jax.random.uniform(k_v, (TEM_SIZE, TEM_SIZE), jnp.float32)                 # nn.Parameter v
    b_attn = jnp.zeros((TEM_SIZE, TEM_SIZE), jnp.float32)                          # nn.Parameter b

    f1 = tatt_f1(seq, w_f, b_f)
    f1 = jax.block_until_ready(f1)

    # Pure-JAX reference for the executed part of forward():
    #   f1[b, t, n] = sum_c W[c] * seq[b, c, n, t] + bias
    ref = jnp.einsum("bcnt,c->btn", seq, w_f) + b_f[0]
    assert f1.shape == (B, TEM_SIZE, NUM_NODES), f1.shape
    assert jnp.allclose(f1, ref, atol=1e-5, rtol=1e-5)

    print("KERNEL_OK")
</pallas_src>

<mosaic_0001>
module attributes {stable_mosaic.version = 11 : i64} {
  func.func @_tatt_f1_kernel(%arg0: memref<2x4x16x24xf32, #tpu.memory_space<vmem>>, %arg1: memref<4xf32, #tpu.memory_space<smem>>, %arg2: memref<1xf32, #tpu.memory_space<smem>>, %arg3: memref<2x24x16xf32, #tpu.memory_space<vmem>>) attributes {dimension_semantics = [], scalar_prefetch = 0 : i64, scratch_operands = 0 : i64, tpu.core_type = #tpu.core_type<tc>} {
    %c0 = arith.constant 0 : index
    %c0_0 = arith.constant 0 : index
    %c0_1 = arith.constant 0 : index
    %c0_2 = arith.constant 0 : index
    %0 = vector.load %arg0[%c0, %c0_0, %c0_1, %c0_2] : memref<2x4x16x24xf32, #tpu.memory_space<vmem>>, vector<2x4x16x24xf32>
    %1 = vector.extract_strided_slice %0 {offsets = [0, 0, 0, 0], sizes = [2, 1, 16, 24], strides = [1, 1, 1, 1]} : vector<2x4x16x24xf32> to vector<2x1x16x24xf32>
    %2 = vector.shape_cast %1 : vector<2x1x16x24xf32> to vector<2x16x24xf32>
    %c0_3 = arith.constant 0 : index
    %3 = memref.load %arg1[%c0_3] : memref<4xf32, #tpu.memory_space<smem>>
    %4 = vector.broadcast %3 : f32 to vector<2x16x24xf32>
    %5 = arith.mulf %2, %4 : vector<2x16x24xf32>
    %6 = vector.extract_strided_slice %0 {offsets = [0, 1, 0, 0], sizes = [2, 1, 16, 24], strides = [1, 1, 1, 1]} : vector<2x4x16x24xf32> to vector<2x1x16x24xf32>
    %7 = vector.shape_cast %6 : vector<2x1x16x24xf32> to vector<2x16x24xf32>
    %c1 = arith.constant 1 : index
    %8 = memref.load %arg1[%c1] : memref<4xf32, #tpu.memory_space<smem>>
    %9 = vector.broadcast %8 : f32 to vector<2x16x24xf32>
    %10 = arith.mulf %7, %9 : vector<2x16x24xf32>
    %11 = arith.addf %5, %10 : vector<2x16x24xf32>
    %12 = vector.extract_strided_slice %0 {offsets = [0, 2, 0, 0], sizes = [2, 1, 16, 24], strides = [1, 1, 1, 1]} : vector<2x4x16x24xf32> to vector<2x1x16x24xf32>
    %13 = vector.shape_cast %12 : vector<2x1x16x24xf32> to vector<2x16x24xf32>
    %c2 = arith.constant 2 : index
    %14 = memref.load %arg1[%c2] : memref<4xf32, #tpu.memory_space<smem>>
    %15 = vector.broadcast %14 : f32 to vector<2x16x24xf32>
    %16 = arith.mulf %13, %15 : vector<2x16x24xf32>
    %17 = arith.addf %11, %16 : vector<2x16x24xf32>
    %18 = vector.extract_strided_slice %0 {offsets = [0, 3, 0, 0], sizes = [2, 1, 16, 24], strides = [1, 1, 1, 1]} : vector<2x4x16x24xf32> to vector<2x1x16x24xf32>
    %19 = vector.shape_cast %18 : vector<2x1x16x24xf32> to vector<2x16x24xf32>
    %c3 = arith.constant 3 : index
    %20 = memref.load %arg1[%c3] : memref<4xf32, #tpu.memory_space<smem>>
    %21 = vector.broadcast %20 : f32 to vector<2x16x24xf32>
    %22 = arith.mulf %19, %21 : vector<2x16x24xf32>
    %23 = arith.addf %17, %22 : vector<2x16x24xf32>
    %c0_4 = arith.constant 0 : index
    %24 = memref.load %arg2[%c0_4] : memref<1xf32, #tpu.memory_space<smem>>
    %25 = vector.broadcast %24 : f32 to vector<2x16x24xf32>
    %26 = arith.addf %23, %25 : vector<2x16x24xf32>
    %27 = tpu.transpose %26, [0, 2, 1] : vector<2x16x24xf32> -> vector<2x24x16xf32>
    %c0_5 = arith.constant 0 : index
    %c0_6 = arith.constant 0 : index
    %c0_7 = arith.constant 0 : index
    %28 = vector.load %arg3[%c0_5, %c0_6, %c0_7] : memref<2x24x16xf32, #tpu.memory_space<vmem>>, vector<2x24x16xf32>
    tpu.vector_store %arg3[%c0_5, %c0_6, %c0_7], %27 {strides = array<i32>} : memref<2x24x16xf32, #tpu.memory_space<vmem>>, vector<2x24x16xf32>,
    return
  }
}

</mosaic_0001>

<llo_original>
// kernel: tpu_custom_call.1
$region0: #{tpu_custom_call.1}
  #allocation0 [shape = 'u32[]', space=smem, size = 0x4, offset = 0x4, fixed_abs, tag = 'smem constant byte address 0x4 - core index']
  #allocation1 [shape = 'u32[144,128]{1,0:T(1,128)}', space=vmem, size = 0x12000, scoped, tag = 'internal scratch']
  #allocation2 [shape = 'f32[1]{0:T(128)S(6)}', space=smem, size = 0x200, scoped, tag = 'scoped memory for tpu_custom_call.1']
  %s0 = inlined_call_operand.hbm [shape: f32[2,4,16,24], index: 0, kind: input, shape index: {}]
  %s1 = inlined_call_operand.vmem [shape: f32[4], index: 1, kind: input, shape index: {}]
  %s2 = inlined_call_operand.<no memory space> [shape: f32[1], index: 2, kind: input, shape index: {}]
  %s3 = inlined_call_operand.vmem [shape: f32[2,24,16], index: 3, kind: output, shape index: {}]
  %s4 = sld [smem:[#allocation0]]
  $region30: #{tpu_custom_call.1} parent=0
    _
  %s6 = ssub.s32 1, %s4
  %s7 = scalar_select 0, %s6, %s4
  %8 = sst [smem:[#allocation2]] %s2
  $region1: #{tpu_custom_call.1} parent=0
    #allocation3 [shape = 'u8[65536]{0}', space=vmem, size = 0x10000, scoped, tag = 'input window, operand 0, single buffered']
    #allocation4 [shape = 's32[1]{0}', space=sflag, size = 0x4, scoped, tag = 'scoped memory for tpu_custom_call.1']
    #allocation5 [shape = 's32[1]{0}', space=sflag, size = 0x4, scoped, tag = 'scoped memory for tpu_custom_call.1']
    #allocation6 [shape = 'u8[512]{0}', space=smem, size = 0x200, scoped, tag = 'input window, operand 1, single buffered']
    %9 = vsyncpa [#allocation4], 0
    %10 = vsyncpa [#allocation5], 0
    // Predicated region
    $region2: #{tpu_custom_call.1} parent=1 // pred_check
      _
    $region3: #{tpu_custom_call.1} parent=1 // pred_check_branch
      %12 = sbr.rel (0) target = $region5
    $region4: #{tpu_custom_call.1} parent=1 // pred_region
      %s14 = ssub.s32 2048, 2048
      %15 = vsyncadd [#allocation4], %s14
      %s16 = sshll.u32 [#allocation3], 4
      %s17 = int_to_ptr.vmem [resolvable:$true] %s16
      %22 = dma.hbm_to_vmem [thread:$0]  %s0, 2048, %s17, [#allocation4], 128, 128, 8
    $region5: #{tpu_custom_call.1} parent=1 // pred_fallthru
      _
    // Predicated region
    $region6: #{tpu_custom_call.1} parent=1 // pred_check
      _
    $region7: #{tpu_custom_call.1} parent=1 // pred_check_branch
      %24 = sbr.rel (0) target = $region9
    $region8: #{tpu_custom_call.1} parent=1 // pred_region
      %s26 = ssub.s32 16, 16
      %27 = vsyncadd [#allocation5], %s26
      %s29 = sshll.u32 %s1, 4
      %s30 = int_to_ptr.vmem [resolvable:$true] %s29
      %32 = dma.vmem_to_smem %s30, 16, [#allocation6], [#allocation5]
    $region9: #{tpu_custom_call.1} parent=1 // pred_fallthru
      _
    // Predicated region
    $region10: #{tpu_custom_call.1} parent=1 // pred_check
      _
    $region11: #{tpu_custom_call.1} parent=1 // pred_check_branch
      %34 = sbr.rel (0) target = $region13
    $region12: #{tpu_custom_call.1} parent=1 // pred_region
      _
    $region13: #{tpu_custom_call.1} parent=1 // pred_fallthru
      _
    // Predicated region
    $region14: #{tpu_custom_call.1} parent=1 // pred_check
      _
    $region15: #{tpu_custom_call.1} parent=1 // pred_check_branch
      %36 = sbr.rel (0) target = $region17
    $region16: #{tpu_custom_call.1} parent=1 // pred_region
      %37 = dma.done [#allocation4], 2048
    $region17: #{tpu_custom_call.1} parent=1 // pred_fallthru
      _
    // Predicated region
    $region18: #{tpu_custom_call.1} parent=1 // pred_check
      _
    $region19: #{tpu_custom_call.1} parent=1 // pred_check_branch
      %39 = sbr.rel (0) target = $region21
    $region20: #{tpu_custom_call.1} parent=1 // pred_region
      %40 = dma.done [#allocation5], 16
    $region21: #{tpu_custom_call.1} parent=1 // pred_fallthru
      _
    %41 = sfence
    %v42 = vld [vmem:[#allocation3] sm:$0xff]
    %v43 = vld [vmem:[#allocation3 + $0x8] sm:$0xff]
    %v44 = vld [vmem:[#allocation3 + $0x10] sm:$0xff]
    %v45 = vld [vmem:[#allocation3 + $0x18] sm:$0xff]
    %v46 = vld [vmem:[#allocation3 + $0x20] sm:$0xff]
    %v47 = vld [vmem:[#allocation3 + $0x28] sm:$0xff]
    %v48 = vld [vmem:[#allocation3 + $0x30] sm:$0xff]
    %v49 = vld [vmem:[#allocation3 + $0x38] sm:$0xff]
    %v50 = vld [vmem:[#allocation3 + $0x40] sm:$0xff]
    %v51 = vld [vmem:[#allocation3 + $0x48] sm:$0xff]
    %v52 = vld [vmem:[#allocation3 + $0x50] sm:$0xff]
    %v53 = vld [vmem:[#allocation3 + $0x58] sm:$0xff]
    %v54 = vld [vmem:[#allocation3 + $0x60] sm:$0xff]
    %v55 = vld [vmem:[#allocation3 + $0x68] sm:$0xff]
    %v56 = vld [vmem:[#allocation3 + $0x70] sm:$0xff]
    %v57 = vld [vmem:[#allocation3 + $0x78] sm:$0xff]
    %s58 = sld [smem:[#allocation6]]
    %v59 = vstv %s58
    %v60 = vmul.f32 %v42, %v59
    %v61 = vmul.f32 %v43, %v59
    %v62 = vmul.f32 %v50, %v59
    %v63 = vmul.f32 %v51, %v59
    %s64 = sld [smem:[#allocation6 + $0x1]]
    %v65 = vstv %s64
    %v66 = vmul.f32 %v44, %v65
    %v67 = vmul.f32 %v45, %v65
    %v68 = vmul.f32 %v52, %v65
    %v69 = vmul.f32 %v53, %v65
    %v70 = vadd.f32 %v60, %v66
    %v71 = vadd.f32 %v61, %v67
    %v72 = vadd.f32 %v62, %v68
    %v73 = vadd.f32 %v63, %v69
    %s74 = sld [smem:[#allocation6 + $0x2]]
    %v75 = vstv %s74
    %v76 = vmul.f32 %v46, %v75
    %v77 = vmul.f32 %v47, %v75
    %v78 = vmul.f32 %v54, %v75
    %v79 = vmul.f32 %v55, %v75
    %v80 = vadd.f32 %v70, %v76
    %v81 = vadd.f32 %v71, %v77
    %v82 = vadd.f32 %v72, %v78
    %v83 = vadd.f32 %v73, %v79
    %s84 = sld [smem:[#allocation6 + $0x3]]
    %v85 = vstv %s84
    %v86 = vmul.f32 %v48, %v85
    %v87 = vmul.f32 %v49, %v85
    %v88 = vmul.f32 %v56, %v85
    %v89 = vmul.f32 %v57, %v85
    %v90 = vadd.f32 %v80, %v86
    %v91 = vadd.f32 %v81, %v87
    %v92 = vadd.f32 %v82, %v88
    %v93 = vadd.f32 %v83, %v89
    %s94 = sld [smem:[#allocation2]]
    %v95 = vstv %s94
    %v96 = vadd.f32 %v90, %v95
    %v97 = vadd.f32 %v91, %v95
    %v98 = vadd.f32 %v92, %v95
    %v99 = vadd.f32 %v93, %v95
    %100 = vxpose.xlu0.b32.start [1/16] %v96, 128
    %101 = vxpose.xlu0.b32.cont [2/16] %v97, 128
    %102 = vxpose.xlu0.b32.cont [3/16] 0.0, 128
    %103 = vxpose.xlu0.b32.cont [4/16] 0.0, 128
    %104 = vxpose.xlu0.b32.cont [5/16] 0.0, 128
    %105 = vxpose.xlu0.b32.cont [6/16] 0.0, 128
    %106 = vxpose.xlu0.b32.cont [7/16] 0.0, 128
    %107 = vxpose.xlu0.b32.cont [8/16] 0.0, 128
    %108 = vxpose.xlu0.b32.cont [9/16] 0.0, 128
    %109 = vxpose.xlu0.b32.cont [10/16] 0.0, 128
    %110 = vxpose.xlu0.b32.cont [11/16] 0.0, 128
    %111 = vxpose.xlu0.b32.cont [12/16] 0.0, 128
    %112 = vxpose.xlu0.b32.cont [13/16] 0.0, 128
    %113 = vxpose.xlu0.b32.cont [14/16] 0.0, 128
    %114 = vxpose.xlu0.b32.cont [15/16] 0.0, 128
    %115 = vxpose.xlu0.b32.end [16/16] 0.0, 128
    %v116 = vpop.trf.xlu0
    %v117 = vpop.trf.xlu0
    %v118 = vpop.trf.xlu0
    %v119 = vpop.trf.xlu0
    %v120 = vpop.trf.xlu0
    %v121 = vpop.trf.xlu0
    %v122 = vpop.trf.xlu0
    %v123 = vpop.trf.xlu0
    %v124 = vpop.trf.xlu0
    %v125 = vpop.trf.xlu0
    %v126 = vpop.trf.xlu0
    %v127 = vpop.trf.xlu0
    %v128 = vpop.trf.xlu0
    %v129 = vpop.trf.xlu0
    %v130 = vpop.trf.xlu0
    %v131 = vpop.trf.xlu0
    %132 = vxpose.xlu0.b32.start [1/16] %v98, 128
    %133 = vxpose.xlu0.b32.cont [2/16] %v99, 128
    %134 = vxpose.xlu0.b32.cont [3/16] 0.0, 128
    %135 = vxpose.xlu0.b32.cont [4/16] 0.0, 128
    %136 = vxpose.xlu0.b32.cont [5/16] 0.0, 128
    %137 = vxpose.xlu0.b32.cont [6/16] 0.0, 128
    %138 = vxpose.xlu0.b32.cont [7/16] 0.0, 128
    %139 = vxpose.xlu0.b32.cont [8/16] 0.0, 128
    %140 = vxpose.xlu0.b32.cont [9/16] 0.0, 128
    %141 = vxpose.xlu0.b32.cont [10/16] 0.0, 128
    %142 = vxpose.xlu0.b32.cont [11/16] 0.0, 128
    %143 = vxpose.xlu0.b32.cont [12/16] 0.0, 128
    %144 = vxpose.xlu0.b32.cont [13/16] 0.0, 128
    %145 = vxpose.xlu0.b32.cont [14/16] 0.0, 128
    %146 = vxpose.xlu0.b32.cont [15/16] 0.0, 128
    %147 = vxpose.xlu0.b32.end [16/16] 0.0, 128
    %v148 = vpop.trf.xlu0
    %v149 = vpop.trf.xlu0
    %v150 = vpop.trf.xlu0
    %v151 = vpop.trf.xlu0
    %v152 = vpop.trf.xlu0
    %v153 = vpop.trf.xlu0
    %v154 = vpop.trf.xlu0
    %v155 = vpop.trf.xlu0
    %v156 = vpop.trf.xlu0
    %v157 = vpop.trf.xlu0
    %v158 = vpop.trf.xlu0
    %v159 = vpop.trf.xlu0
    %v160 = vpop.trf.xlu0
    %v161 = vpop.trf.xlu0
    %v162 = vpop.trf.xlu0
    %v163 = vpop.trf.xlu0
    %vm164 = vcmask 130048
    %165 = vst.msk [vmem:[%s3] sm:$0xff] %vm164, %v116
    %166 = vst.msk [vmem:[%s3 + $0x8] sm:$0xff] %vm164, %v117
    %167 = vst.msk [vmem:[%s3 + $0x10] sm:$0xff] %vm164, %v118
    %168 = vst.msk [vmem:[%s3 + $0x18] sm:$0xff] %vm164, %v148
    %169 = vst.msk [vmem:[%s3 + $0x20] sm:$0xff] %vm164, %v149
    %170 = vst.msk [vmem:[%s3 + $0x28] sm:$0xff] %vm164, %v150
    // Predicated region
    $region22: #{tpu_custom_call.1} parent=1 // pred_check
      _
    $region23: #{tpu_custom_call.1} parent=1 // pred_check_branch
      %172 = sbr.rel (0) target = $region25
    $region24: #{tpu_custom_call.1} parent=1 // pred_region
      _
    $region25: #{tpu_custom_call.1} parent=1 // pred_fallthru
      _
    // Predicated region
    $region26: #{tpu_custom_call.1} parent=1 // pred_check
      _
    $region27: #{tpu_custom_call.1} parent=1 // pred_check_branch
      %174 = sbr.rel (0) target = $region29
    $region28: #{tpu_custom_call.1} parent=1 // pred_region
      _
    $region29: #{tpu_custom_call.1} parent=1 // pred_fallthru
      _
    %175 = vsyncpa [#allocation4], 1
    %176 = vsyncpa [#allocation5], 1

</llo_original>
